<compile_context>
chip_gen: v7x
topology: tpu7x:2x2x1
jax: 0.10.0
libtpu: 0.0.40
codegen_flags: <defaults>
</compile_context>

<pallas_src>
import functools

import jax
import jax.numpy as jnp
from jax.experimental import pallas as pl
from jax.experimental.pallas import tpu as pltpu


def _ce_kernel(logits_ref, targets_ref, out_ref, *, batch, block_b):
    # logits_ref : (TB, C)   native dtype (f32 or bf16), VMEM
    # targets_ref: (TB, 1)   int32, VMEM
    # out_ref    : (1, 1, 1) f32 partial sum for this tile
    i = pl.program_id(0)

    x_nat = logits_ref[...]                                   # (TB, C) native
    x = x_nat.astype(jnp.float32)                             # f32 for max/exp
    t = targets_ref[...]                                      # (TB, 1) int32

    # Numerically-stable logsumexp.
    m = jnp.max(x, axis=-1, keepdims=True)                    # (TB, 1)
    sum_exp = jnp.sum(jnp.exp(x - m), axis=-1, keepdims=True)  # (TB, 1)

    # Gather logits[r, target_r] on the native-dtype tile via one-hot select.
    # Exact: summing a one-hot row only ever adds zeros.
    class_ids = jax.lax.broadcasted_iota(jnp.int32, x_nat.shape, 1)   # (TB, C)
    tgt = jnp.sum(jnp.where(class_ids == t, x_nat, jnp.zeros_like(x_nat)),
                  axis=-1, keepdims=True).astype(jnp.float32)         # (TB, 1)

    # lse - x[t] = m + log(sum_exp) - x[t]
    per_example = m + jnp.log(sum_exp) - tgt                  # (TB, 1) f32

    # Mask rows of a (possibly partial / garbage-padded) last tile.
    row_ids = i * block_b + jax.lax.broadcasted_iota(jnp.int32, (block_b, 1), 0)
    per_example = jnp.where(row_ids < batch, per_example, 0.0)

    out_ref[...] = jnp.sum(per_example).reshape(1, 1, 1)


def _vmem_capacity_bytes():
    """Physical VMEM per TensorCore; conservative (v7x-sized) fallback."""
    try:
        return int(pltpu.get_tpu_info().vmem_capacity_bytes)
    except Exception:
        return 64 * 1024 * 1024


def _pick_block_b(B, C, itemsize, vmem_capacity):
    # Honest per-row working-set estimate:
    #   2 * native logits tile (double-buffered input)
    # + ~4 f32-sized in-kernel temporaries (upcast, shifted, exp, iota/select)
    # + targets (negligible).
    bytes_per_row = C * (2 * itemsize + 4 * 4) + 2 * 4
    budget = min(vmem_capacity // 3, 40 * 1024 * 1024)   # ~21 MiB v7x, ~40 MiB v5e/v6e
    rows = max(8, budget // bytes_per_row)
    block_b = int(min(2048, (rows // 8) * 8))
    return B if B <= block_b else block_b


def cross_entropy_adv_loss(logits, targets, *, block_b=None):
    """Equivalent of CrossEntropyAdvLoss().forward(logits, targets).

    logits : (B, C) float array (any float dtype; bf16 stays bf16 in HBM)
    targets: (B,) integer class indices in [0, C)
    returns: scalar float32 mean cross-entropy loss
    """
    B, C = logits.shape
    targets2d = targets.astype(jnp.int32).reshape(B, 1)
    itemsize = jnp.dtype(logits.dtype).itemsize

    vmem_cap = _vmem_capacity_bytes()
    if block_b is None:
        block_b = _pick_block_b(B, C, itemsize, vmem_cap)
    if B <= block_b:
        block_b = B                      # full-extent block: no (8,128) constraint
    grid_b = pl.cdiv(B, block_b)

    # Explicit limit (never rely on the scoped default): ~3/4 of physical VMEM.
    vmem_limit = int(min(vmem_cap * 3 // 4, 100 * 1024 * 1024))

    kernel = functools.partial(_ce_kernel, batch=B, block_b=block_b)

    partial_sums = pl.pallas_call(
        kernel,
        out_shape=jax.ShapeDtypeStruct((grid_b, 1, 1), jnp.float32),
        grid_spec=pltpu.PrefetchScalarGridSpec(
            num_scalar_prefetch=0,
            grid=(grid_b,),
            in_specs=[
                pl.BlockSpec((block_b, C), lambda i: (i, 0)),   # logits tile
                pl.BlockSpec((block_b, 1), lambda i: (i, 0)),   # targets column
            ],
            out_specs=pl.BlockSpec((1, 1, 1), lambda i: (i, 0, 0)),  # per-tile partial
        ),
        compiler_params=pltpu.CompilerParams(
            dimension_semantics=("parallel",),   # dual-TC sharding on v7x
            vmem_limit_bytes=vmem_limit,
        ),
    )(logits, targets2d)

    return jnp.sum(partial_sums) / B


def _reference(logits, targets):
    logits = logits.astype(jnp.float32)
    log_probs = jax.nn.log_softmax(logits, axis=-1)
    return -jnp.mean(log_probs[jnp.arange(logits.shape[0]), targets])


if __name__ == "__main__":
    key = jax.random.PRNGKey(0)
    k1, k2, k3, k4 = jax.random.split(key, 4)

    # Case 1: small f32, single tile (matches the module's default usage).
    B, C = 8, 32
    logits = jax.random.normal(k1, (B, C), dtype=jnp.float32)
    targets = jax.random.randint(k2, (B,), 0, C, dtype=jnp.int32)
    loss = cross_entropy_adv_loss(logits, targets)
    jax.block_until_ready(loss)
    ref = _reference(logits, targets)
    assert jnp.allclose(loss, ref, atol=1e-5), (loss, ref)

    # Case 2: bf16 logits, multi-tile "parallel" grid with a partial last tile.
    B2, C2 = 20, 160
    logits2 = jax.random.normal(k3, (B2, C2), dtype=jnp.float32).astype(jnp.bfloat16)
    targets2 = jax.random.randint(k4, (B2,), 0, C2, dtype=jnp.int32)
    loss2 = cross_entropy_adv_loss(logits2, targets2, block_b=8)
    jax.block_until_ready(loss2)
    ref2 = _reference(logits2, targets2)
    assert jnp.allclose(loss2, ref2, atol=1e-5), (loss2, ref2)

    print("KERNEL_OK")
</pallas_src>

<mosaic_0001>
module attributes {stable_mosaic.version = 11 : i64} {
  func.func @_ce_kernel(%arg0: i32, %arg1: memref<8x32xf32, #tpu.memory_space<vmem>>, %arg2: memref<8x1xi32, #tpu.memory_space<vmem>>, %arg3: memref<1x1x1xf32, #tpu.memory_space<vmem>>) attributes {dimension_semantics = [#tpu.dimension_semantics<parallel>], iteration_bounds = array<i64: 1>, scalar_prefetch = 0 : i64, scratch_operands = 0 : i64, tpu.core_type = #tpu.core_type<tc>, window_params = [{transform_indices = @transform_0, window_bounds = array<i64: 8, 32>}, {transform_indices = @transform_1, window_bounds = array<i64: 8, 1>}, {transform_indices = @transform_2, window_bounds = array<i64: 1, 1, 1>}]} {
    %c0 = arith.constant 0 : index
    %c0_0 = arith.constant 0 : index
    %0 = vector.load %arg1[%c0, %c0_0] : memref<8x32xf32, #tpu.memory_space<vmem>>, vector<8x32xf32>
    %c0_1 = arith.constant 0 : index
    %c0_2 = arith.constant 0 : index
    %1 = vector.load %arg2[%c0_1, %c0_2] : memref<8x1xi32, #tpu.memory_space<vmem>>, vector<8x1xi32>
    %cst = arith.constant dense<0xFF800000> : vector<8xf32>
    %2 = vector.multi_reduction <maximumf>, %0, %cst [1] : vector<8x32xf32> to vector<8xf32>
    %3 = vector.shape_cast %2 : vector<8xf32> to vector<8x1xf32>
    %4 = vector.broadcast %3 : vector<8x1xf32> to vector<8x32xf32>
    %5 = arith.subf %0, %4 : vector<8x32xf32>
    %6 = math.exp %5 : vector<8x32xf32>
    %cst_3 = arith.constant dense<0.000000e+00> : vector<8xf32>
    %7 = vector.multi_reduction <add>, %6, %cst_3 [1] : vector<8x32xf32> to vector<8xf32>
    %8 = vector.shape_cast %7 : vector<8xf32> to vector<8x1xf32>
    %9 = tpu.iota {dimensions = array<i32: 1>} : vector<8x32xi32>
    %10 = vector.broadcast %1 : vector<8x1xi32> to vector<8x32xi32>
    %11 = arith.cmpi eq, %9, %10 : vector<8x32xi32>
    %cst_4 = arith.constant 0.000000e+00 : f32
    %12 = vector.broadcast %cst_4 : f32 to vector<8x32xf32>
    %13 = arith.select %11, %0, %12 : vector<8x32xi1>, vector<8x32xf32>
    %cst_5 = arith.constant dense<0.000000e+00> : vector<8xf32>
    %14 = vector.multi_reduction <add>, %13, %cst_5 [1] : vector<8x32xf32> to vector<8xf32>
    %15 = vector.shape_cast %14 : vector<8xf32> to vector<8x1xf32>
    %16 = math.log %8 : vector<8x1xf32>
    %17 = arith.addf %3, %16 : vector<8x1xf32>
    %18 = arith.subf %17, %15 : vector<8x1xf32>
    %c8_i32 = arith.constant 8 : i32
    %19 = arith.muli %arg0, %c8_i32 : i32
    %20 = tpu.iota {dimensions = array<i32: 0>} : vector<8x1xi32>
    %21 = vector.broadcast %19 : i32 to vector<8x1xi32>
    %22 = arith.addi %21, %20 : vector<8x1xi32>
    %c8_i32_6 = arith.constant 8 : i32
    %23 = vector.broadcast %c8_i32_6 : i32 to vector<8x1xi32>
    %24 = arith.cmpi slt, %22, %23 : vector<8x1xi32>
    %cst_7 = arith.constant 0.000000e+00 : f32
    %25 = vector.broadcast %cst_7 : f32 to vector<8x1xf32>
    %26 = arith.select %24, %18, %25 : vector<8x1xi1>, vector<8x1xf32>
    %27 = vector.shape_cast %26 : vector<8x1xf32> to vector<1x8x1xf32>
    %cst_8 = arith.constant dense<0.000000e+00> : vector<1xf32>
    %28 = vector.multi_reduction <add>, %27, %cst_8 [1, 2] : vector<1x8x1xf32> to vector<1xf32>
    %29 = vector.shape_cast %28 : vector<1xf32> to vector<1x1x1xf32>
    %30 = vector.extract %29[0, 0, 0] : f32 from vector<1x1x1xf32>
    %31 = vector.broadcast %30 : f32 to vector<1x1x1xf32>
    %c0_9 = arith.constant 0 : index
    %c0_10 = arith.constant 0 : index
    %c0_11 = arith.constant 0 : index
    %32 = vector.load %arg3[%c0_9, %c0_10, %c0_11] : memref<1x1x1xf32, #tpu.memory_space<vmem>>, vector<1x1x1xf32>
    tpu.vector_store %arg3[%c0_9, %c0_10, %c0_11], %31 {strides = array<i32>} : memref<1x1x1xf32, #tpu.memory_space<vmem>>, vector<1x1x1xf32>,
    return
  }
  func.func @transform_0(%arg0: i32) -> (i32, i32) {
    %c0_i32 = arith.constant 0 : i32
    %c0_i32_0 = arith.constant 0 : i32
    return %arg0, %c0_i32 : i32, i32
  }
  func.func @transform_1(%arg0: i32) -> (i32, i32) {
    %c0_i32 = arith.constant 0 : i32
    %c0_i32_0 = arith.constant 0 : i32
    return %arg0, %c0_i32 : i32, i32
  }
  func.func @transform_2(%arg0: i32) -> (i32, i32, i32) {
    %c0_i32 = arith.constant 0 : i32
    %c0_i32_0 = arith.constant 0 : i32
    %c0_i32_1 = arith.constant 0 : i32
    return %arg0, %c0_i32, %c0_i32_0 : i32, i32, i32
  }
}

</mosaic_0001>

<llo_original>
// kernel: tpu_custom_call.1
$region0: #{tpu_custom_call.1}
  #allocation0 [shape = 'u32[]', space=smem, size = 0x4, offset = 0x4, fixed_abs, tag = 'smem constant byte address 0x4 - core index']
  #allocation1 [shape = 'u32[144,128]{1,0:T(1,128)}', space=vmem, size = 0x12000, scoped, tag = 'internal scratch']
  %s0 = inlined_call_operand.vmem [shape: f32[8,32], index: 0, kind: input, shape index: {}]
  %s1 = inlined_call_operand.vmem [shape: s32[8,1], index: 1, kind: input, shape index: {}]
  %s2 = inlined_call_operand.hbm [shape: f32[1,1,1], index: 2, kind: output, shape index: {}]
  %s3 = sld [smem:[#allocation0]]
  $region18: #{tpu_custom_call.1} parent=0
    _
  %s5 = ssub.s32 1, %s3
  %s6 = scalar_select 0, %s5, %s3
  $region1: #{tpu_custom_call.1} parent=0
    #allocation2 [shape = 'u8[512]{0}', space=vmem, size = 0x400, scoped, tag = 'output window, operand 0, single buffered']
    #allocation3 [shape = 's32[1]{0}', space=sflag, size = 0x4, scoped, tag = 'scoped memory for tpu_custom_call.1']
    %7 = vsyncpa [#allocation3], 0
    // Predicated region
    $region2: #{tpu_custom_call.1} parent=1 // pred_check
      _
    $region3: #{tpu_custom_call.1} parent=1 // pred_check_branch
      %9 = sbr.rel (0) target = $region5
    $region4: #{tpu_custom_call.1} parent=1 // pred_region
      _
    $region5: #{tpu_custom_call.1} parent=1 // pred_fallthru
      _
    // Predicated region
    $region6: #{tpu_custom_call.1} parent=1 // pred_check
      _
    $region7: #{tpu_custom_call.1} parent=1 // pred_check_branch
      %11 = sbr.rel (0) target = $region9
    $region8: #{tpu_custom_call.1} parent=1 // pred_region
      _
    $region9: #{tpu_custom_call.1} parent=1 // pred_fallthru
      _
    %v12 = vld [vmem:[%s0] sm:$0xff]
    %v13 = vld [vmem:[%s1] sm:$0xff]
    %vm14 = vcmask 261120
    %v15 = vsel %vm14, %v12, -inf
    %16 = vmax.xlane.f32.xlu0 %v15
    %v17 = vpop.xlane.xlu0 %16
    %v18 = vsub.f32 %v12, %v17
    %v19 = vmul.f32 %v18, 1.442695
    %v20 = vpow.pop %v19
    %v21 = vsel %vm14, %v20, 0.0
    %22 = vadd.xlane.f32.xlu0 %v21
    %v23 = vpop.xlane.xlu0 %22
    %v24 = vlaneseq
    %v25 = vand.u32 %v24, 127
    %26 = vset.pattern.permute.xlu0 0
    %27 = vperm.xlu0 %26, %v13
    %v28 = vpop.permute.xlu0 %27
    %vm29 = vcmp.eq.s32.totalorder %v25, %v28
    %v30 = vsel %vm29, %v12, 0.0
    %v31 = vsel %vm14, %v30, 0.0
    %32 = vadd.xlane.f32.xlu0 %v31
    %v33 = vpop.xlane.xlu0 %32
    %v34 = vlog2.pop %v23
    %v35 = vmul.f32 %v34, 0.6931472
    %v36 = vadd.f32 %v17, %v35
    %v37 = vsub.f32 %v36, %v33
    %s38 = smul.u32 0, 8
    %v39 = vlaneseq
    %v40 = vshrl.u32 %v39, 7
    %v41 = vstv %s38
    %v42 = vadd.s32 %v41, %v40
    %vm43 = vcmp.lt.s32.totalorder %v42, 8
    %v44 = vsel %vm43, %v37, 0.0
    %vm45 = vcmask 7168
    %v46 = vsel %vm45, %v44, 0.0
    %47 = vadd.xlane.f32.xlu0 %v46
    %v48 = vpop.xlane.xlu0 %47
    %v49 = vrot.slane %v48, 4
    %v50 = vadd.f32 %v48, %v49
    %v51 = vrot.slane %v50, 2
    %v52 = vadd.f32 %v50, %v51
    %v53 = vrot.slane %v52, 1
    %v54 = vadd.f32 %v52, %v53
    %s55 = vtos %v54
    %v56 = vstv %s55
    %vm57 = vcmask 0
    %58 = vst.msk [vmem:[#allocation2] sm:$0x1] %vm57, %v56
    // Predicated region
    $region10: #{tpu_custom_call.1} parent=1 // pred_check
      _
    $region11: #{tpu_custom_call.1} parent=1 // pred_check_branch
      %60 = sbr.rel (0) target = $region13
    $region12: #{tpu_custom_call.1} parent=1 // pred_region
      %s62 = ssub.s32 16, 16
      %63 = vsyncadd [#allocation3], %s62
      %s65 = sshll.u32 [#allocation2], 4
      %s66 = int_to_ptr.vmem [resolvable:$true] %s65
      %68 = dma.vmem_to_hbm [thread:$0]  %s66, 16, %s2, [#allocation3]
    $region13: #{tpu_custom_call.1} parent=1 // pred_fallthru
      _
    // Predicated region
    $region14: #{tpu_custom_call.1} parent=1 // pred_check
      _
    $region15: #{tpu_custom_call.1} parent=1 // pred_check_branch
      %70 = sbr.rel (0) target = $region17
    $region16: #{tpu_custom_call.1} parent=1 // pred_region
      %71 = dma.done [#allocation3], 16
    $region17: #{tpu_custom_call.1} parent=1 // pred_fallthru
      _
    %72 = vsyncpa [#allocation3], 1

</llo_original>
